<compile_context>
chip_gen: v6e
topology: v6e:2x2x1
jax: 0.10.0
libtpu: 0.0.40
codegen_flags: <defaults>
</compile_context>

<pallas_src>
import math

import jax
import jax.numpy as jnp
from jax.experimental import pallas as pl
from jax.experimental.pallas import tpu as pltpu

_LOG_2PI = math.log(2.0 * math.pi)


def _round_up(n, m):
    return ((n + m - 1) // m) * m


# ----------------------------------------------------------------------------
# Pallas kernel: conditioner MLP + conditional-affine log_prob, fully fused
# ----------------------------------------------------------------------------
def _flow_logprob_kernel(x_ref, c_ref,
                         w1_ref, b1_ref, w2_ref, b2_ref,
                         wmu_ref, bmu_ref, wls_ref, bls_ref,
                         o_ref):
    # --- conditioner MLP on context c (bf16 storage, f32 MXU accumulation) ---
    c = c_ref[...].astype(w1_ref.dtype)
    h = jnp.dot(c, w1_ref[...], preferred_element_type=jnp.float32)
    h = jnp.maximum(h + b1_ref[...].astype(jnp.float32), 0.0)

    h = h.astype(w2_ref.dtype)
    h = jnp.dot(h, w2_ref[...], preferred_element_type=jnp.float32)
    h = jnp.maximum(h + b2_ref[...].astype(jnp.float32), 0.0)

    h = h.astype(wmu_ref.dtype)
    mu = (jnp.dot(h, wmu_ref[...], preferred_element_type=jnp.float32)
          + bmu_ref[...].astype(jnp.float32))
    log_sigma = (jnp.dot(h, wls_ref[...], preferred_element_type=jnp.float32)
                 + bls_ref[...].astype(jnp.float32))

    # --- conditional affine flow log-prob (all f32 elementwise; exp on EUP) ---
    x = x_ref[...].astype(jnp.float32)
    z = (x - mu) * jnp.exp(-log_sigma)
    d = x_ref.shape[-1]
    lp = (-0.5 * jnp.sum(z * z, axis=-1, keepdims=True)
          - jnp.sum(log_sigma, axis=-1, keepdims=True)
          - 0.5 * d * _LOG_2PI)
    o_ref[...] = lp.astype(o_ref.dtype)


# ----------------------------------------------------------------------------
# Wrapper matching Flow.forward(x, c) -> log_prob of shape (B,)
# ----------------------------------------------------------------------------
def flow_log_prob(x, c, params, *, batch_tile=1024):
    assert x.ndim == 2, f"x must be a 2D tensor, got {x.ndim} with shape {x.shape}"
    assert c.ndim == 2, f"c must be a 2D tensor, got {c.ndim} with shape {c.shape}"
    (w1, b1), (w2, b2), (wmu, bmu), (wls, bls) = params
    d_cond, h1 = w1.shape
    h2 = w2.shape[1]
    d_model = wmu.shape[1]
    assert x.shape[-1] == d_model, f"x feature dim {x.shape[-1]} != d_model {d_model}"
    assert c.shape[-1] == d_cond, f"c feature dim {c.shape[-1]} != d_condition {d_cond}"
    assert x.shape[0] == c.shape[0]

    B = x.shape[0]
    # Batch tile: multiple of 8 sublanes, capped so tiles + weights stay well
    # inside scoped VMEM even on v7x (64 MiB physical / ~32 MiB scoped).
    tb = max(8, min(int(batch_tile), _round_up(B, 8)))
    n_blocks = -(-B // tb)
    B_pad = n_blocks * tb
    if B_pad != B:
        x = jnp.pad(x, ((0, B_pad - B), (0, 0)))
        c = jnp.pad(c, ((0, B_pad - B), (0, 0)))

    # --- VMEM budget (double-buffered activation tiles + resident weights) ---
    act_bytes = 2 * tb * (d_model * x.dtype.itemsize
                          + d_cond * c.dtype.itemsize
                          + 4)                       # out tile (f32, width 1)
    weight_bytes = sum(int(w.size) * w.dtype.itemsize + int(b.size) * b.dtype.itemsize
                       for (w, b) in params)
    vmem_limit = int(min(32 << 20, max(2 * (act_bytes + 2 * weight_bytes) + (4 << 20),
                                       16 << 20)))

    # --- Cost estimate for the XLA scheduler ---
    flops = 2 * B_pad * (d_cond * h1 + h1 * h2 + 2 * h2 * d_model) + 8 * B_pad * d_model
    bytes_accessed = (B_pad * (d_model * x.dtype.itemsize + d_cond * c.dtype.itemsize + 4)
                      + weight_bytes)
    cost = pl.CostEstimate(flops=int(flops),
                           transcendentals=int(B_pad * d_model),
                           bytes_accessed=int(bytes_accessed))

    # Tiled along batch (pipelined); weights/biases constant -> VMEM-resident.
    tile = lambda a: pl.BlockSpec((tb, a.shape[1]), lambda i: (i, 0))
    const = lambda a: pl.BlockSpec(a.shape, lambda i: tuple(0 for _ in a.shape))

    out = pl.pallas_call(
        _flow_logprob_kernel,
        out_shape=jax.ShapeDtypeStruct((B_pad, 1), jnp.float32),
        grid_spec=pltpu.PrefetchScalarGridSpec(
            num_scalar_prefetch=0,
            grid=(n_blocks,),
            in_specs=[tile(x), tile(c),
                      const(w1), const(b1), const(w2), const(b2),
                      const(wmu), const(bmu), const(wls), const(bls)],
            out_specs=pl.BlockSpec((tb, 1), lambda i: (i, 0)),
        ),
        compiler_params=pltpu.CompilerParams(
            dimension_semantics=("parallel",),
            vmem_limit_bytes=vmem_limit,
        ),
        cost_estimate=cost,
    )(x, c, w1, b1, w2, b2, wmu, bmu, wls, bls)

    return out.reshape(-1)[:B]


# ----------------------------------------------------------------------------
# Parameter construction (PyTorch nn.Linear-style uniform init), bf16 storage
# ----------------------------------------------------------------------------
def init_flow_params(key, d_model, d_condition, hidden=(64, 64), dtype=jnp.bfloat16):
    def linear(key, fan_in, fan_out):
        kw, kb = jax.random.split(key)
        bound = 1.0 / math.sqrt(fan_in)
        w = jax.random.uniform(kw, (fan_in, fan_out), jnp.float32, -bound, bound)
        b = jax.random.uniform(kb, (1, fan_out), jnp.float32, -bound, bound)
        return w.astype(dtype), b.astype(dtype)

    k1, k2, k3, k4 = jax.random.split(key, 4)
    h1, h2 = hidden
    return (linear(k1, d_condition, h1),
            linear(k2, h1, h2),
            linear(k3, h2, d_model),    # mu head
            linear(k4, h2, d_model))    # log_sigma head


# ----------------------------------------------------------------------------
# Pure-JAX reference (mirrors the kernel's precision handling)
# ----------------------------------------------------------------------------
def flow_log_prob_ref(x, c, params):
    (w1, b1), (w2, b2), (wmu, bmu), (wls, bls) = params
    h = jnp.dot(c.astype(w1.dtype), w1, preferred_element_type=jnp.float32)
    h = jnp.maximum(h + b1.astype(jnp.float32), 0.0).astype(w2.dtype)
    h = jnp.dot(h, w2, preferred_element_type=jnp.float32)
    h = jnp.maximum(h + b2.astype(jnp.float32), 0.0).astype(wmu.dtype)
    mu = jnp.dot(h, wmu, preferred_element_type=jnp.float32) + bmu.astype(jnp.float32)
    ls = jnp.dot(h, wls, preferred_element_type=jnp.float32) + bls.astype(jnp.float32)
    xf = x.astype(jnp.float32)
    z = (xf - mu) * jnp.exp(-ls)
    d = x.shape[-1]
    return (-0.5 * jnp.sum(z * z, axis=-1)
            - jnp.sum(ls, axis=-1)
            - 0.5 * d * _LOG_2PI)


if __name__ == "__main__":
    key = jax.random.PRNGKey(0)
    kx, kc, kp = jax.random.split(key, 3)

    B, D_MODEL, D_COND, HIDDEN = 64, 16, 32, (64, 64)
    DTYPE = jnp.bfloat16   # bf16 storage, f32 accumulation inside the kernel

    params = init_flow_params(kp, D_MODEL, D_COND, HIDDEN, dtype=DTYPE)
    x = jax.random.normal(kx, (B, D_MODEL), jnp.float32).astype(DTYPE)
    c = jax.random.normal(kc, (B, D_COND), jnp.float32).astype(DTYPE)

    # small batch_tile here so the test exercises a multi-step pipelined grid
    lp = flow_log_prob(x, c, params, batch_tile=32)
    lp = jax.block_until_ready(lp)

    lp_ref = flow_log_prob_ref(x, c, params)
    assert lp.shape == (B,)
    assert lp.dtype == jnp.float32
    assert bool(jnp.all(jnp.isfinite(lp)))
    assert jnp.allclose(lp, lp_ref, atol=1e-2, rtol=1e-2), "mismatch vs reference"

    # TODO(synk): Flow.sample (drawing from flow(c)) and other flow_cls choices
    # (spline / autoregressive transforms) are not implemented; this kernel covers
    # the forward path of a conditional affine (diagonal-Gaussian) flow only.
    print("KERNEL_OK")
</pallas_src>

<mosaic_0001>
module attributes {stable_mosaic.version = 11 : i64} {
  func.func @_flow_logprob_kernel(%arg0: i32, %arg1: memref<32x16xbf16, #tpu.memory_space<vmem>>, %arg2: memref<32x32xbf16, #tpu.memory_space<vmem>>, %arg3: memref<32x64xbf16, #tpu.memory_space<vmem>>, %arg4: memref<1x64xbf16, #tpu.memory_space<vmem>>, %arg5: memref<64x64xbf16, #tpu.memory_space<vmem>>, %arg6: memref<1x64xbf16, #tpu.memory_space<vmem>>, %arg7: memref<64x16xbf16, #tpu.memory_space<vmem>>, %arg8: memref<1x16xbf16, #tpu.memory_space<vmem>>, %arg9: memref<64x16xbf16, #tpu.memory_space<vmem>>, %arg10: memref<1x16xbf16, #tpu.memory_space<vmem>>, %arg11: memref<32x1xf32, #tpu.memory_space<vmem>>) attributes {dimension_semantics = [#tpu.dimension_semantics<parallel>], iteration_bounds = array<i64: 2>, scalar_prefetch = 0 : i64, scratch_operands = 0 : i64, tpu.core_type = #tpu.core_type<tc>, window_params = [{transform_indices = @transform_0, window_bounds = array<i64: 32, 16>}, {transform_indices = @transform_1, window_bounds = array<i64: 32, 32>}, {pipeline_mode = #tpu.pipeline_mode<synchronous>, transform_indices = @transform_2, window_bounds = array<i64: 32, 64>}, {pipeline_mode = #tpu.pipeline_mode<synchronous>, transform_indices = @transform_3, window_bounds = array<i64: 1, 64>}, {pipeline_mode = #tpu.pipeline_mode<synchronous>, transform_indices = @transform_4, window_bounds = array<i64: 64, 64>}, {pipeline_mode = #tpu.pipeline_mode<synchronous>, transform_indices = @transform_5, window_bounds = array<i64: 1, 64>}, {pipeline_mode = #tpu.pipeline_mode<synchronous>, transform_indices = @transform_6, window_bounds = array<i64: 64, 16>}, {pipeline_mode = #tpu.pipeline_mode<synchronous>, transform_indices = @transform_7, window_bounds = array<i64: 1, 16>}, {pipeline_mode = #tpu.pipeline_mode<synchronous>, transform_indices = @transform_8, window_bounds = array<i64: 64, 16>}, {pipeline_mode = #tpu.pipeline_mode<synchronous>, transform_indices = @transform_9, window_bounds = array<i64: 1, 16>}, {transform_indices = @transform_10, window_bounds = array<i64: 32, 1>}]} {
    %c0 = arith.constant 0 : index
    %c0_0 = arith.constant 0 : index
    %0 = vector.load %arg2[%c0, %c0_0] : memref<32x32xbf16, #tpu.memory_space<vmem>>, vector<32x32xbf16>
    %c0_1 = arith.constant 0 : index
    %c0_2 = arith.constant 0 : index
    %1 = vector.load %arg3[%c0_1, %c0_2] : memref<32x64xbf16, #tpu.memory_space<vmem>>, vector<32x64xbf16>
    %cst = arith.constant dense<0.000000e+00> : vector<32x64xf32>
    %2 = tpu.matmul %0, %1, %cst {dimension_numbers = #tpu.dot_dimension_numbers<[1], [0], [0], [1], [0, 0, 1, 1], [], []>} : vector<32x32xbf16>, vector<32x64xbf16>, vector<32x64xf32> -> vector<32x64xf32>
    %c0_3 = arith.constant 0 : index
    %c0_4 = arith.constant 0 : index
    %3 = vector.load %arg4[%c0_3, %c0_4] : memref<1x64xbf16, #tpu.memory_space<vmem>>, vector<1x64xbf16>
    %4 = arith.extf %3 : vector<1x64xbf16> to vector<1x64xf32>
    %5 = vector.broadcast %4 : vector<1x64xf32> to vector<32x64xf32>
    %6 = arith.addf %2, %5 : vector<32x64xf32>
    %cst_5 = arith.constant 0.000000e+00 : f32
    %7 = vector.broadcast %cst_5 : f32 to vector<32x64xf32>
    %8 = arith.maximumf %6, %7 : vector<32x64xf32>
    %9 = arith.truncf %8 : vector<32x64xf32> to vector<32x64xbf16>
    %c0_6 = arith.constant 0 : index
    %c0_7 = arith.constant 0 : index
    %10 = vector.load %arg5[%c0_6, %c0_7] : memref<64x64xbf16, #tpu.memory_space<vmem>>, vector<64x64xbf16>
    %cst_8 = arith.constant dense<0.000000e+00> : vector<32x64xf32>
    %11 = tpu.matmul %9, %10, %cst_8 {dimension_numbers = #tpu.dot_dimension_numbers<[1], [0], [0], [1], [0, 0, 1, 1], [], []>} : vector<32x64xbf16>, vector<64x64xbf16>, vector<32x64xf32> -> vector<32x64xf32>
    %c0_9 = arith.constant 0 : index
    %c0_10 = arith.constant 0 : index
    %12 = vector.load %arg6[%c0_9, %c0_10] : memref<1x64xbf16, #tpu.memory_space<vmem>>, vector<1x64xbf16>
    %13 = arith.extf %12 : vector<1x64xbf16> to vector<1x64xf32>
    %14 = vector.broadcast %13 : vector<1x64xf32> to vector<32x64xf32>
    %15 = arith.addf %11, %14 : vector<32x64xf32>
    %cst_11 = arith.constant 0.000000e+00 : f32
    %16 = vector.broadcast %cst_11 : f32 to vector<32x64xf32>
    %17 = arith.maximumf %15, %16 : vector<32x64xf32>
    %18 = arith.truncf %17 : vector<32x64xf32> to vector<32x64xbf16>
    %c0_12 = arith.constant 0 : index
    %c0_13 = arith.constant 0 : index
    %19 = vector.load %arg7[%c0_12, %c0_13] : memref<64x16xbf16, #tpu.memory_space<vmem>>, vector<64x16xbf16>
    %cst_14 = arith.constant dense<0.000000e+00> : vector<32x16xf32>
    %20 = tpu.matmul %18, %19, %cst_14 {dimension_numbers = #tpu.dot_dimension_numbers<[1], [0], [0], [1], [0, 0, 1, 1], [], []>} : vector<32x64xbf16>, vector<64x16xbf16>, vector<32x16xf32> -> vector<32x16xf32>
    %c0_15 = arith.constant 0 : index
    %c0_16 = arith.constant 0 : index
    %21 = vector.load %arg8[%c0_15, %c0_16] : memref<1x16xbf16, #tpu.memory_space<vmem>>, vector<1x16xbf16>
    %22 = arith.extf %21 : vector<1x16xbf16> to vector<1x16xf32>
    %23 = vector.broadcast %22 : vector<1x16xf32> to vector<32x16xf32>
    %24 = arith.addf %20, %23 : vector<32x16xf32>
    %c0_17 = arith.constant 0 : index
    %c0_18 = arith.constant 0 : index
    %25 = vector.load %arg9[%c0_17, %c0_18] : memref<64x16xbf16, #tpu.memory_space<vmem>>, vector<64x16xbf16>
    %cst_19 = arith.constant dense<0.000000e+00> : vector<32x16xf32>
    %26 = tpu.matmul %18, %25, %cst_19 {dimension_numbers = #tpu.dot_dimension_numbers<[1], [0], [0], [1], [0, 0, 1, 1], [], []>} : vector<32x64xbf16>, vector<64x16xbf16>, vector<32x16xf32> -> vector<32x16xf32>
    %c0_20 = arith.constant 0 : index
    %c0_21 = arith.constant 0 : index
    %27 = vector.load %arg10[%c0_20, %c0_21] : memref<1x16xbf16, #tpu.memory_space<vmem>>, vector<1x16xbf16>
    %28 = arith.extf %27 : vector<1x16xbf16> to vector<1x16xf32>
    %29 = vector.broadcast %28 : vector<1x16xf32> to vector<32x16xf32>
    %30 = arith.addf %26, %29 : vector<32x16xf32>
    %c0_22 = arith.constant 0 : index
    %c0_23 = arith.constant 0 : index
    %31 = vector.load %arg1[%c0_22, %c0_23] : memref<32x16xbf16, #tpu.memory_space<vmem>>, vector<32x16xbf16>
    %32 = arith.extf %31 : vector<32x16xbf16> to vector<32x16xf32>
    %33 = arith.subf %32, %24 : vector<32x16xf32>
    %cst_24 = arith.constant 0.000000e+00 : f32
    %34 = vector.broadcast %cst_24 : f32 to vector<32x16xf32>
    %35 = arith.subf %34, %30 : vector<32x16xf32>
    %36 = math.exp %35 : vector<32x16xf32>
    %37 = arith.mulf %33, %36 : vector<32x16xf32>
    %38 = arith.mulf %37, %37 : vector<32x16xf32>
    %cst_25 = arith.constant dense<0.000000e+00> : vector<32xf32>
    %39 = vector.multi_reduction <add>, %38, %cst_25 [1] : vector<32x16xf32> to vector<32xf32>
    %40 = vector.shape_cast %39 : vector<32xf32> to vector<32x1xf32>
    %cst_26 = arith.constant -5.000000e-01 : f32
    %41 = vector.broadcast %cst_26 : f32 to vector<32x1xf32>
    %42 = arith.mulf %41, %40 : vector<32x1xf32>
    %cst_27 = arith.constant dense<0.000000e+00> : vector<32xf32>
    %43 = vector.multi_reduction <add>, %30, %cst_27 [1] : vector<32x16xf32> to vector<32xf32>
    %44 = vector.shape_cast %43 : vector<32xf32> to vector<32x1xf32>
    %45 = arith.subf %42, %44 : vector<32x1xf32>
    %cst_28 = arith.constant 14.7030163 : f32
    %46 = vector.broadcast %cst_28 : f32 to vector<32x1xf32>
    %47 = arith.subf %45, %46 : vector<32x1xf32>
    %c0_29 = arith.constant 0 : index
    %c0_30 = arith.constant 0 : index
    %48 = vector.load %arg11[%c0_29, %c0_30] : memref<32x1xf32, #tpu.memory_space<vmem>>, vector<32x1xf32>
    tpu.vector_store %arg11[%c0_29, %c0_30], %47 {strides = array<i32>} : memref<32x1xf32, #tpu.memory_space<vmem>>, vector<32x1xf32>,
    return
  }
  func.func @transform_0(%arg0: i32) -> (i32, i32) {
    %c0_i32 = arith.constant 0 : i32
    %c0_i32_0 = arith.constant 0 : i32
    return %arg0, %c0_i32 : i32, i32
  }
  func.func @transform_1(%arg0: i32) -> (i32, i32) {
    %c0_i32 = arith.constant 0 : i32
    %c0_i32_0 = arith.constant 0 : i32
    return %arg0, %c0_i32 : i32, i32
  }
  func.func @transform_2(%arg0: i32) -> (i32, i32) {
    %c0_i32 = arith.constant 0 : i32
    %c0_i32_0 = arith.constant 0 : i32
    %c0_i32_1 = arith.constant 0 : i32
    return %c0_i32, %c0_i32_0 : i32, i32
  }
  func.func @transform_3(%arg0: i32) -> (i32, i32) {
    %c0_i32 = arith.constant 0 : i32
    %c0_i32_0 = arith.constant 0 : i32
    %c0_i32_1 = arith.constant 0 : i32
    return %c0_i32, %c0_i32_0 : i32, i32
  }
  func.func @transform_4(%arg0: i32) -> (i32, i32) {
    %c0_i32 = arith.constant 0 : i32
    %c0_i32_0 = arith.constant 0 : i32
    %c0_i32_1 = arith.constant 0 : i32
    return %c0_i32, %c0_i32_0 : i32, i32
  }
  func.func @transform_5(%arg0: i32) -> (i32, i32) {
    %c0_i32 = arith.constant 0 : i32
    %c0_i32_0 = arith.constant 0 : i32
    %c0_i32_1 = arith.constant 0 : i32
    return %c0_i32, %c0_i32_0 : i32, i32
  }
  func.func @transform_6(%arg0: i32) -> (i32, i32) {
    %c0_i32 = arith.constant 0 : i32
    %c0_i32_0 = arith.constant 0 : i32
    %c0_i32_1 = arith.constant 0 : i32
    return %c0_i32, %c0_i32_0 : i32, i32
  }
  func.func @transform_7(%arg0: i32) -> (i32, i32) {
    %c0_i32 = arith.constant 0 : i32
    %c0_i32_0 = arith.constant 0 : i32
    %c0_i32_1 = arith.constant 0 : i32
    return %c0_i32, %c0_i32_0 : i32, i32
  }
  func.func @transform_8(%arg0: i32) -> (i32, i32) {
    %c0_i32 = arith.constant 0 : i32
    %c0_i32_0 = arith.constant 0 : i32
    %c0_i32_1 = arith.constant 0 : i32
    return %c0_i32, %c0_i32_0 : i32, i32
  }
  func.func @transform_9(%arg0: i32) -> (i32, i32) {
    %c0_i32 = arith.constant 0 : i32
    %c0_i32_0 = arith.constant 0 : i32
    %c0_i32_1 = arith.constant 0 : i32
    return %c0_i32, %c0_i32_0 : i32, i32
  }
  func.func @transform_10(%arg0: i32) -> (i32, i32) {
    %c0_i32 = arith.constant 0 : i32
    %c0_i32_0 = arith.constant 0 : i32
    return %arg0, %c0_i32 : i32, i32
  }
}

</mosaic_0001>

<llo_original>
// kernel: tpu_custom_call.1
$region0: #{tpu_custom_call.1}
  #allocation0 [shape = 'u32[]', space=smem, size = 0x4, offset = 0x4, fixed_abs, tag = 'smem constant byte address 0x4 - core index']
  #allocation1 [shape = 'u32[144,128]{1,0:T(1,128)}', space=vmem, size = 0x12000, scoped, tag = 'internal scratch']
  %s0 = inlined_call_operand.vmem [shape: bf16[64,16], index: 0, kind: input, shape index: {}]
  %s1 = inlined_call_operand.vmem [shape: bf16[64,32], index: 1, kind: input, shape index: {}]
  %s2 = inlined_call_operand.vmem [shape: bf16[32,64], index: 2, kind: input, shape index: {}]
  %s3 = inlined_call_operand.vmem [shape: bf16[1,64], index: 3, kind: input, shape index: {}]
  %s4 = inlined_call_operand.vmem [shape: bf16[64,64], index: 4, kind: input, shape index: {}]
  %s5 = inlined_call_operand.vmem [shape: bf16[1,64], index: 5, kind: input, shape index: {}]
  %s6 = inlined_call_operand.vmem [shape: bf16[64,16], index: 6, kind: input, shape index: {}]
  %s7 = inlined_call_operand.vmem [shape: bf16[1,16], index: 7, kind: input, shape index: {}]
  %s8 = inlined_call_operand.vmem [shape: bf16[64,16], index: 8, kind: input, shape index: {}]
  %s9 = inlined_call_operand.vmem [shape: bf16[1,16], index: 9, kind: input, shape index: {}]
  %s10 = inlined_call_operand.vmem [shape: f32[64,1], index: 10, kind: output, shape index: {}]
  %s11 = sld [smem:[#allocation0]]
  $region73: #{tpu_custom_call.1} parent=0
    _
  %s13 = ssub.s32 1, %s11
  %s14 = scalar_select 0, %s13, %s11
  loop: start=0, step=1, limit=4
  $region2: #{tpu_custom_call.1} parent=0 // loop_pre_header
    _
  $region3: #{tpu_custom_call.1} parent=0 // loop_header
    %s16 = sphi 0, %s20
    %p17 = scmp.ge.s32.totalorder %s16, 4
    %s26 = sphi 0, %s28
    %s29 = sphi 0, %s26
    %s30 = sphi 0, %s29
    %s46 = sphi 0, %s30
    %s52 = sphi 0, %s54
    %s55 = sphi 0, %s52
    %s56 = sphi 0, %s55
    %s72 = sphi 0, %s56
    %s76 = sphi 0, %s76
    %s78 = sphi 0, %s76
    %s79 = sphi 0, %s78
    %s93 = sphi 0, %s79
    %s97 = sphi 0, %s97
    %s99 = sphi 0, %s97
    %s100 = sphi 0, %s99
    %s114 = sphi 0, %s100
    %s118 = sphi 0, %s118
    %s120 = sphi 0, %s118
    %s121 = sphi 0, %s120
    %s135 = sphi 0, %s121
    %s139 = sphi 0, %s139
    %s141 = sphi 0, %s139
    %s142 = sphi 0, %s141
    %s156 = sphi 0, %s142
    %s160 = sphi 0, %s160
    %s162 = sphi 0, %s160
    %s163 = sphi 0, %s162
    %s177 = sphi 0, %s163
    %s181 = sphi 0, %s181
    %s183 = sphi 0, %s181
    %s184 = sphi 0, %s183
    %s198 = sphi 0, %s184
    %s202 = sphi 0, %s202
    %s204 = sphi 0, %s202
    %s205 = sphi 0, %s204
    %s219 = sphi 0, %s205
    %s223 = sphi 0, %s223
    %s225 = sphi 0, %s223
    %s226 = sphi 0, %s225
    %s240 = sphi 0, %s226
    %s246 = sphi 0, %s248
    %s249 = sphi 0, %s246
    %s250 = sphi 0, %s249
    %s266 = sphi 0, %s250
  $region4: #{tpu_custom_call.1} parent=0 // loop_header_branch
    %19 = sbr.rel (%p17) target = $region8
  $region5: #{tpu_custom_call.1} parent=0 // loop_body
    %s21 = ssub.s32 %s16, 1
    %s22 = ssub.s32 %s16, 2
    %s23 = sadd.s32 %s16, 1
    %s24 = ssub.s32 %s16, %s23
    %p25 = scmp.eq.s32.totalorder %s24, 0
    %s27 = sadd.s32 %s26, 1
    %s28 = scalar_select %p25, %s26, %s27
    %p31 = pneg %p25
    %p32 = scmp.eq.s32.totalorder %s16, 1
    %p33 = por %p31, %p32
    %p34 = scmp.ne.s32.totalorder %s26, %s29
    %p35 = scmp.eq.s32.totalorder %s16, 0
    %p36 = por %p34, %p35
    %p37 = scmp.ne.s32.totalorder %s26, %s29
    %p38 = scmp.eq.s32.totalorder %s21, 1
    %p39 = por %p37, %p38
    %p40 = scmp.ne.s32.totalorder %s29, %s30
    %p41 = scmp.eq.s32.totalorder %s21, 0
    %p42 = por %p40, %p41
    %p43 = scmp.ne.s32.totalorder %s29, %s30
    %p44 = scmp.eq.s32.totalorder %s22, 1
    %p45 = por %p43, %p44
    %p47 = scmp.ne.s32.totalorder %s30, %s46
    %p48 = scmp.eq.s32.totalorder %s22, 0
    %p49 = por %p47, %p48
    %s50 = ssub.s32 %s16, %s23
    %p51 = scmp.eq.s32.totalorder %s50, 0
    %s53 = sadd.s32 %s52, 1
    %s54 = scalar_select %p51, %s52, %s53
    %p57 = pneg %p51
    %p58 = scmp.eq.s32.totalorder %s16, 1
    %p59 = por %p57, %p58
    %p60 = scmp.ne.s32.totalorder %s52, %s55
    %p61 = scmp.eq.s32.totalorder %s16, 0
    %p62 = por %p60, %p61
    %p63 = scmp.ne.s32.totalorder %s52, %s55
    %p64 = scmp.eq.s32.totalorder %s21, 1
    %p65 = por %p63, %p64
    %p66 = scmp.ne.s32.totalorder %s55, %s56
    %p67 = scmp.eq.s32.totalorder %s21, 0
    %p68 = por %p66, %p67
    %p69 = scmp.ne.s32.totalorder %s55, %s56
    %p70 = scmp.eq.s32.totalorder %s22, 1
    %p71 = por %p69, %p70
    %p73 = scmp.ne.s32.totalorder %s56, %s72
    %p74 = scmp.eq.s32.totalorder %s22, 0
    %p75 = por %p73, %p74
    %s77 = sadd.s32 %s76, 1
    %p80 = scmp.eq.s32.totalorder %s16, 1
    %p81 = scmp.ne.s32.totalorder %s76, %s78
    %p82 = scmp.eq.s32.totalorder %s16, 0
    %p83 = por %p81, %p82
    %p84 = scmp.ne.s32.totalorder %s76, %s78
    %p85 = scmp.eq.s32.totalorder %s21, 1
    %p86 = por %p84, %p85
    %p87 = scmp.ne.s32.totalorder %s78, %s79
    %p88 = scmp.eq.s32.totalorder %s21, 0
    %p89 = por %p87, %p88
    %p90 = scmp.ne.s32.totalorder %s78, %s79
    %p91 = scmp.eq.s32.totalorder %s22, 1
    %p92 = por %p90, %p91
    %p94 = scmp.ne.s32.totalorder %s79, %s93
    %p95 = scmp.eq.s32.totalorder %s22, 0
    %p96 = por %p94, %p95
    %s98 = sadd.s32 %s97, 1
    %p101 = scmp.eq.s32.totalorder %s16, 1
    %p102 = scmp.ne.s32.totalorder %s97, %s99
    %p103 = scmp.eq.s32.totalorder %s16, 0
    %p104 = por %p102, %p103
    %p105 = scmp.ne.s32.totalorder %s97, %s99
    %p106 = scmp.eq.s32.totalorder %s21, 1
    %p107 = por %p105, %p106
    %p108 = scmp.ne.s32.totalorder %s99, %s100
    %p109 = scmp.eq.s32.totalorder %s21, 0
    %p110 = por %p108, %p109
    %p111 = scmp.ne.s32.totalorder %s99, %s100
    %p112 = scmp.eq.s32.totalorder %s22, 1
    %p113 = por %p111, %p112
    %p115 = scmp.ne.s32.totalorder %s100, %s114
    %p116 = scmp.eq.s32.totalorder %s22, 0
    %p117 = por %p115, %p116
    %s119 = sadd.s32 %s118, 1
    %p122 = scmp.eq.s32.totalorder %s16, 1
    %p123 = scmp.ne.s32.totalorder %s118, %s120
    %p124 = scmp.eq.s32.totalorder %s16, 0
    %p125 = por %p123, %p124
    %p126 = scmp.ne.s32.totalorder %s118, %s120
    %p127 = scmp.eq.s32.totalorder %s21, 1
    %p128 = por %p126, %p127
    %p129 = scmp.ne.s32.totalorder %s120, %s121
    %p130 = scmp.eq.s32.totalorder %s21, 0
    %p131 = por %p129, %p130
    %p132 = scmp.ne.s32.totalorder %s120, %s121
    %p133 = scmp.eq.s32.totalorder %s22, 1
    %p134 = por %p132, %p133
    %p136 = scmp.ne.s32.totalorder %s121, %s135
    %p137 = scmp.eq.s32.totalorder %s22, 0
    %p138 = por %p136, %p137
    %s140 = sadd.s32 %s139, 1
    %p143 = scmp.eq.s32.totalorder %s16, 1
    %p144 = scmp.ne.s32.totalorder %s139, %s141
    %p145 = scmp.eq.s32.totalorder %s16, 0
    %p146 = por %p144, %p145
    %p147 = scmp.ne.s32.totalorder %s139, %s141
    %p148 = scmp.eq.s32.totalorder %s21, 1
    %p149 = por %p147, %p148
    %p150 = scmp.ne.s32.totalorder %s141, %s142
    %p151 = scmp.eq.s32.totalorder %s21, 0
    %p152 = por %p150, %p151
    %p153 = scmp.ne.s32.totalorder %s141, %s142
    %p154 = scmp.eq.s32.totalorder %s22, 1
    %p155 = por %p153, %p154
    %p157 = scmp.ne.s32.totalorder %s142, %s156
    %p158 = scmp.eq.s32.totalorder %s22, 0
    %p159 = por %p157, %p158
    %s161 = sadd.s32 %s160, 1
    %p164 = scmp.eq.s32.totalorder %s16, 1
    %p165 = scmp.ne.s32.totalorder %s160, %s162
    %p166 = scmp.eq.s32.totalorder %s16, 0
    %p167 = por %p165, %p166
    %p168 = scmp.ne.s32.totalorder %s160, %s162
    %p169 = scmp.eq.s32.totalorder %s21, 1
    %p170 = por %p168, %p169
    %p171 = scmp.ne.s32.totalorder %s162, %s163
    %p172 = scmp.eq.s32.totalorder %s21, 0
    %p173 = por %p171, %p172
    %p174 = scmp.ne.s32.totalorder %s162, %s163
    %p175 = scmp.eq.s32.totalorder %s22, 1
    %p176 = por %p174, %p175
    %p178 = scmp.ne.s32.totalorder %s163, %s177
    %p179 = scmp.eq.s32.totalorder %s22, 0
    %p180 = por %p178, %p179
    %s182 = sadd.s32 %s181, 1
    %p185 = scmp.eq.s32.totalorder %s16, 1
    %p186 = scmp.ne.s32.totalorder %s181, %s183
    %p187 = scmp.eq.s32.totalorder %s16, 0
    %p188 = por %p186, %p187
    %p189 = scmp.ne.s32.totalorder %s181, %s183
    %p190 = scmp.eq.s32.totalorder %s21, 1
    %p191 = por %p189, %p190
    %p192 = scmp.ne.s32.totalorder %s183, %s184
    %p193 = scmp.eq.s32.totalorder %s21, 0
    %p194 = por %p192, %p193
    %p195 = scmp.ne.s32.totalorder %s183, %s184
    %p196 = scmp.eq.s32.totalorder %s22, 1
    %p197 = por %p195, %p196
    %p199 = scmp.ne.s32.totalorder %s184, %s198
    %p200 = scmp.eq.s32.totalorder %s22, 0
    %p201 = por %p199, %p200
    %s203 = sadd.s32 %s202, 1
    %p206 = scmp.eq.s32.totalorder %s16, 1
    %p207 = scmp.ne.s32.totalorder %s202, %s204
    %p208 = scmp.eq.s32.totalorder %s16, 0
    %p209 = por %p207, %p208
    %p210 = scmp.ne.s32.totalorder %s202, %s204
    %p211 = scmp.eq.s32.totalorder %s21, 1
    %p212 = por %p210, %p211
    %p213 = scmp.ne.s32.totalorder %s204, %s205
    %p214 = scmp.eq.s32.totalorder %s21, 0
    %p215 = por %p213, %p214
    %p216 = scmp.ne.s32.totalorder %s204, %s205
    %p217 = scmp.eq.s32.totalorder %s22, 1
    %p218 = por %p216, %p217
    %p220 = scmp.ne.s32.totalorder %s205, %s219
    %p221 = scmp.eq.s32.totalorder %s22, 0
    %p222 = por %p220, %p221
    %s224 = sadd.s32 %s223, 1
    %p227 = scmp.eq.s32.totalorder %s16, 1
    %p228 = scmp.ne.s32.totalorder %s223, %s225
    %p229 = scmp.eq.s32.totalorder %s16, 0
    %p230 = por %p228, %p229
    %p231 = scmp.ne.s32.totalorder %s223, %s225
    %p232 = scmp.eq.s32.totalorder %s21, 1
    %p233 = por %p231, %p232
    %p234 = scmp.ne.s32.totalorder %s225, %s226
    %p235 = scmp.eq.s32.totalorder %s21, 0
    %p236 = por %p234, %p235
    %p237 = scmp.ne.s32.totalorder %s225, %s226
    %p238 = scmp.eq.s32.totalorder %s22, 1
    %p239 = por %p237, %p238
    %p241 = scmp.ne.s32.totalorder %s226, %s240
    %p242 = scmp.eq.s32.totalorder %s22, 0
    %p243 = por %p241, %p242
    %s244 = ssub.s32 %s16, %s23
    %p245 = scmp.eq.s32.totalorder %s244, 0
    %s247 = sadd.s32 %s246, 1
    %s248 = scalar_select %p245, %s246, %s247
    %p251 = pneg %p245
    %p252 = scmp.eq.s32.totalorder %s16, 1
    %p253 = por %p251, %p252
    %p254 = scmp.ne.s32.totalorder %s246, %s249
    %p255 = scmp.eq.s32.totalorder %s16, 0
    %p256 = por %p254, %p255
    %p257 = scmp.ne.s32.totalorder %s246, %s249
    %p258 = scmp.eq.s32.totalorder %s21, 1
    %p259 = por %p257, %p258
    %p260 = scmp.ne.s32.totalorder %s249, %s250
    %p261 = scmp.eq.s32.totalorder %s21, 0
    %p262 = por %p260, %p261
    %p263 = scmp.ne.s32.totalorder %s249, %s250
    %p264 = scmp.eq.s32.totalorder %s22, 1
    %p265 = por %p263, %p264
    %p267 = scmp.ne.s32.totalorder %s250, %s266
    %p268 = scmp.eq.s32.totalorder %s22, 0
    %p269 = por %p267, %p268
    %p270 = scmp.le.s32.totalorder 1, %s16
    %p271 = scmp.lt.s32.totalorder %s16, 3
    %p272 = pnand %p270, %p271
    %p273 = pneg %p272
    // Predicated region
    $region9: #{tpu_custom_call.1} parent=5 // pred_check
      _
    $region10: #{tpu_custom_call.1} parent=5 // pred_check_branch
      %275 = sbr.rel (%p272) target = $region12
    $region11: #{tpu_custom_call.1} parent=5 // pred_region
      %s276 = ssub.s32 %s16, 1
      // Predicated region
      $region13: #{tpu_custom_call.1} parent=11 // pred_check
        %p277 = pneg %p89
      $region14: #{tpu_custom_call.1} parent=11 // pred_check_branch
        %279 = sbr.rel (%p277) target = $region16
      $region15: #{tpu_custom_call.1} parent=11 // pred_region
        _
      $region16: #{tpu_custom_call.1} parent=11 // pred_fallthru
        _
      // Predicated region
      $region17: #{tpu_custom_call.1} parent=11 // pred_check
        %p280 = pneg %p110
      $region18: #{tpu_custom_call.1} parent=11 // pred_check_branch
        %282 = sbr.rel (%p280) target = $region20
      $region19: #{tpu_custom_call.1} parent=11 // pred_region
        _
      $region20: #{tpu_custom_call.1} parent=11 // pred_fallthru
        _
      // Predicated region
      $region21: #{tpu_custom_call.1} parent=11 // pred_check
        %p283 = pneg %p131
      $region22: #{tpu_custom_call.1} parent=11 // pred_check_branch
        %285 = sbr.rel (%p283) target = $region24
      $region23: #{tpu_custom_call.1} parent=11 // pred_region
        _
      $region24: #{tpu_custom_call.1} parent=11 // pred_fallthru
        _
      // Predicated region
      $region25: #{tpu_custom_call.1} parent=11 // pred_check
        %p286 = pneg %p152
      $region26: #{tpu_custom_call.1} parent=11 // pred_check_branch
        %288 = sbr.rel (%p286) target = $region28
      $region27: #{tpu_custom_call.1} parent=11 // pred_region
        _
      $region28: #{tpu_custom_call.1} parent=11 // pred_fallthru
        _
      // Predicated region
      $region29: #{tpu_custom_call.1} parent=11 // pred_check
        %p289 = pneg %p173
      $region30: #{tpu_custom_call.1} parent=11 // pred_check_branch
        %291 = sbr.rel (%p289) target = $region32
      $region31: #{tpu_custom_call.1} parent=11 // pred_region
        _
      $region32: #{tpu_custom_call.1} parent=11 // pred_fallthru
        _
      // Predicated region
      $region33: #{tpu_custom_call.1} parent=11 // pred_check
        %p292 = pneg %p194
      $region34: #{tpu_custom_call.1} parent=11 // pred_check_branch
        %294 = sbr.rel (%p292) target = $region36
      $region35: #{tpu_custom_call.1} parent=11 // pred_region
        _
      $region36: #{tpu_custom_call.1} parent=11 // pred_fallthru
        _
      // Predicated region
      $region37: #{tpu_custom_call.1} parent=11 // pred_check
        %p295 = pneg %p215
      $region38: #{tpu_custom_call.1} parent=11 // pred_check_branch
        %297 = sbr.rel (%p295) target = $region40
      $region39: #{tpu_custom_call.1} parent=11 // pred_region
        _
      $region40: #{tpu_custom_call.1} parent=11 // pred_fallthru
        _
      // Predicated region
      $region41: #{tpu_custom_call.1} parent=11 // pred_check
        %p298 = pneg %p236
      $region42: #{tpu_custom_call.1} parent=11 // pred_check_branch
        %300 = sbr.rel (%p298) target = $region44
      $region43: #{tpu_custom_call.1} parent=11 // pred_region
        _
      $region44: #{tpu_custom_call.1} parent=11 // pred_fallthru
        _
    $region12: #{tpu_custom_call.1} parent=5 // pred_fallthru
      _
    %p301 = scmp.lt.s32.totalorder %s16, 2
    // Predicated region
    $region45: #{tpu_custom_call.1} parent=5 // pred_check
      %p302 = pneg %p301
    $region46: #{tpu_custom_call.1} parent=5 // pred_check_branch
      %304 = sbr.rel (%p302) target = $region48
    $region47: #{tpu_custom_call.1} parent=5 // pred_region
      // Predicated region
      $region49: #{tpu_custom_call.1} parent=47 // pred_check
        %p305 = pneg %p36
      $region50: #{tpu_custom_call.1} parent=47 // pred_check_branch
        %307 = sbr.rel (%p305) target = $region52
      $region51: #{tpu_custom_call.1} parent=47 // pred_region
        %s308 = smul.u32 4, %s16
        %p309 = scmp.lt.s32.totalorder %s308, 7
        %s310 = scalar_select %p309, %s308, 7
        %s311 = smul.addr %s310, 4
        %s312 = scalar_lea.vmem %s0, %s311
        %s313 = smul.u32 4, %s16
      $region52: #{tpu_custom_call.1} parent=47 // pred_fallthru
        _
      // Predicated region
      $region53: #{tpu_custom_call.1} parent=47 // pred_check
        %p314 = pneg %p62
      $region54: #{tpu_custom_call.1} parent=47 // pred_check_branch
        %316 = sbr.rel (%p314) target = $region56
      $region55: #{tpu_custom_call.1} parent=47 // pred_region
        %s317 = smul.u32 4, %s16
        %p318 = scmp.lt.s32.totalorder %s317, 7
        %s319 = scalar_select %p318, %s317, 7
        %s320 = smul.addr %s319, 4
        %s321 = scalar_lea.vmem %s1, %s320
        %s322 = smul.u32 4, %s16
      $region56: #{tpu_custom_call.1} parent=47 // pred_fallthru
        _
    $region48: #{tpu_custom_call.1} parent=5 // pred_fallthru
      _
    %p323 = scmp.le.s32.totalorder 1, %s16
    %p324 = scmp.lt.s32.totalorder %s16, 3
    %p325 = pnand %p323, %p324
    %p326 = pneg %p325
    // Predicated region
    $region57: #{tpu_custom_call.1} parent=5 // pred_check
      _
    $region58: #{tpu_custom_call.1} parent=5 // pred_check_branch
      %328 = sbr.rel (%p325) target = $region60
    $region59: #{tpu_custom_call.1} parent=5 // pred_region
      %s329 = ssub.s32 %s16, 1
      %s330 = smul.u32 4, %s21
      %p331 = scmp.lt.s32.totalorder %s330, 7
      %s332 = scalar_select %p331, %s330, 7
      %s333 = smul.addr %s332, 4
      %s334 = scalar_lea.vmem %s0, %s333
      %p335 = pneg %p42
      %p336 = pneg %p39
      %s337 = smul.u32 4, %s21
      %p338 = scmp.lt.s32.totalorder %s337, 7
      %s339 = scalar_select %p338, %s337, 7
      %s340 = smul.addr %s339, 4
      %s341 = scalar_lea.vmem %s1, %s340
      %p342 = pneg %p68
      %p343 = pneg %p65
      %p344 = pneg %p89
      %p345 = pneg %p86
      %p346 = pneg %p110
      %p347 = pneg %p107
      %p348 = pneg %p131
      %p349 = pneg %p128
      %p350 = pneg %p152
      %p351 = pneg %p149
      %p352 = pneg %p173
      %p353 = pneg %p170
      %p354 = pneg %p194
      %p355 = pneg %p191
      %p356 = pneg %p215
      %p357 = pneg %p212
      %p358 = pneg %p236
      %p359 = pneg %p233
      %p360 = pneg %p262
      %p361 = pneg %p259
      %s362 = smul.u32 4, %s21
      %p363 = scmp.lt.s32.totalorder %s362, 7
      %s364 = scalar_select %p363, %s362, 7
      %s365 = smul.addr %s364, 8
      %s366 = scalar_lea.vmem %s10, %s365
      %s367 = smul.u32 4, %s21
      %p368 = scmp.lt.s32.totalorder %s367, 7
      %s369 = scalar_select %p368, %s367, 7
      %s370 = smul.addr %s369, 4
      %s371 = scalar_lea.vmem %s0, %s370
      %s372 = smul.u32 4, %s21
      %s373 = smul.u32 4, %s21
      %p374 = scmp.lt.s32.totalorder %s373, 7
      %s375 = scalar_select %p374, %s373, 7
      %s376 = smul.addr %s375, 4
      %s377 = scalar_lea.vmem %s1, %s376
      %s378 = smul.u32 4, %s21
      %s379 = smul.u32 4, %s21
      %p380 = scmp.lt.s32.totalorder %s379, 7
      %s381 = scalar_select %p380, %s379, 7
      %s382 = smul.addr %s381, 8
      %s383 = scalar_lea.vmem %s10, %s382
      %s384 = smul.u32 4, %s21
      %v386 = vld [vmem:[%s377] sm:$0xf]
      %v387 = vld [vmem:[%s377 + $0x4] sm:$0xf]
      %v388 = vld [vmem:[%s377 + $0x8] sm:$0xf]
      %v389 = vld [vmem:[%s377 + $0xc] sm:$0xf]
      %v390 = vld [vmem:[%s2] sm:$0xf]
      %v391 = vld [vmem:[%s2 + $0x4] sm:$0xf]
      %v392 = vld [vmem:[%s2 + $0x8] sm:$0xf]
      %v393 = vld [vmem:[%s2 + $0xc] sm:$0xf]
      %v394 = vld [vmem:[%s3] sm:$0x1]
      %v395 = vunpack.c.l.bf16 %v394
      %v396 = vlaneseq
      %v397 = vshrl.u32 %v396, 7
      %v398 = vsub.s32 0, %v397
      %v399 = vrot.slane %v395, %v398
      %v404 = vunpack.c.l.b16 %v386
      %v405 = vunpack.c.l.b16 %v387
      %v406 = vunpack.c.l.b16 %v388
      %v407 = vunpack.c.l.b16 %v389
      %v408 = vpack.c.b16 %v405, %v404
      %v409 = vpack.c.b16 %v407, %v406
      %v414 = vunpack.c.l.b16 %v390
      %v415 = vunpack.c.l.b16 %v391
      %v416 = vunpack.c.l.b16 %v392
      %v417 = vunpack.c.l.b16 %v393
      %v418 = vpack.c.b16 %v415, %v414
      %v419 = vpack.c.b16 %v417, %v416
      %vm422 = vcmask 261120
      %v424 = vsel %vm422, %v408, 0
      %v427 = vsel %vm422, %v409, 0
      %429 = vmatprep.subr.bf16.mxu0 0
      %430 = vmatpush1.bf16.msra.mxu0 0
      %431 = vmatprep.subr.bf16.mxu0 0
      %432 = vmatpush1.bf16.msra.mxu0 0
      %433 = vmatprep.subr.bf16.mxu0 0
      %434 = vmatpush1.bf16.msra.mxu0 0
      %435 = vmatprep.subr.bf16.mxu0 0
      %436 = vmatpush1.bf16.msra.mxu0 0
      %437 = vmatprep.subr.bf16.mxu0 0
      %438 = vmatpush1.bf16.msra.mxu0 0
      %439 = vmatprep.subr.bf16.mxu0 0
      %440 = vmatpush1.bf16.msra.mxu0 0
      %441 = vmatprep.subr.bf16.mxu0 0
      %442 = vmatpush1.bf16.msra.mxu0 %v419
      %443 = vmatprep.subr.bf16.mxu0 0
      %444 = vmatpush1.bf16.msra.mxu0 %v418
      %445 = vmatprep.subr.bf16.mxu0 0
      %446 = vmatpush2.bf16.msra.mxu0 0
      %447 = vmatprep.subr.bf16.mxu0 0
      %448 = vmatpush2.bf16.msra.mxu0 0
      %449 = vmatprep.subr.bf16.mxu0 0
      %450 = vmatpush2.bf16.msra.mxu0 0
      %451 = vmatprep.subr.bf16.mxu0 0
      %452 = vmatpush2.bf16.msra.mxu0 0
      %453 = vmatprep.subr.bf16.mxu0 0
      %454 = vmatpush2.bf16.msra.mxu0 0
      %455 = vmatprep.subr.bf16.mxu0 0
      %456 = vmatpush2.bf16.msra.mxu0 0
      %457 = vmatprep.subr.bf16.mxu0 0
      %458 = vmatpush2.bf16.msra.mxu0 0
      %459 = vmatprep.subr.bf16.mxu0 0
      %460 = vmatpush2.bf16.msra.mxu0 0
      %461 = vmatprep.mubr.bf16.mxu0 0
      %462 = vmatmul.mubr.bf16.gmra.mxu0 %v424
      %v463 = vpop.f32.mrf.mxu0
      %v464 = vadd.f32 %v399, %v463
      %v465 = vpop.f32.mrf.mxu0
      %v466 = vpop.f32.mrf.mxu0
      %v467 = vadd.f32 %v399, %v466
      %v468 = vpop.f32.mrf.mxu0
      %469 = vmatprep.mubr.bf16.mxu0 0
      %470 = vmatmul.mubr.bf16.gmra.mxu0 %v427
      %v471 = vpop.f32.mrf.mxu0
      %v472 = vadd.f32 %v399, %v471
      %v473 = vpop.f32.mrf.mxu0
      %v474 = vpop.f32.mrf.mxu0
      %v475 = vadd.f32 %v399, %v474
      %v476 = vpop.f32.mrf.mxu0
      %477 = vdwg.mxu0
      %v478 = vmax.f32 %v464, 0.0
      %v479 = vmax.f32 %v467, 0.0
      %v480 = vmax.f32 %v472, 0.0
      %v481 = vmax.f32 %v475, 0.0
      %v482 = vpack.c.bf16 %v479, %v478
      %v483 = vpack.c.bf16 %v481, %v480
      %v484 = vld [vmem:[%s4] sm:$0xf]
      %v485 = vld [vmem:[%s4 + $0x4] sm:$0xf]
      %v486 = vld [vmem:[%s4 + $0x8] sm:$0xf]
      %v487 = vld [vmem:[%s4 + $0xc] sm:$0xf]
      %v488 = vld [vmem:[%s4 + $0x10] sm:$0xf]
      %v489 = vld [vmem:[%s4 + $0x14] sm:$0xf]
      %v490 = vld [vmem:[%s4 + $0x18] sm:$0xf]
      %v491 = vld [vmem:[%s4 + $0x1c] sm:$0xf]
      %v492 = vld [vmem:[%s5] sm:$0x1]
      %v493 = vunpack.c.l.bf16 %v492
      %v494 = vlaneseq
      %v495 = vshrl.u32 %v494, 7
      %v496 = vsub.s32 0, %v495
      %v497 = vrot.slane %v493, %v496
      %v506 = vunpack.c.l.b16 %v484
      %v507 = vunpack.c.l.b16 %v485
      %v508 = vunpack.c.l.b16 %v486
      %v509 = vunpack.c.l.b16 %v487
      %v510 = vunpack.c.l.b16 %v488
      %v511 = vunpack.c.l.b16 %v489
      %v512 = vunpack.c.l.b16 %v490
      %v513 = vunpack.c.l.b16 %v491
      %v514 = vpack.c.b16 %v507, %v506
      %v515 = vpack.c.b16 %v509, %v508
      %v516 = vpack.c.b16 %v511, %v510
      %v517 = vpack.c.b16 %v513, %v512
      %vm522 = vcmask 523264
      %v524 = vsel %vm522, %v482, 0
      %v527 = vsel %vm522, %v483, 0
      %529 = vmatprep.subr.bf16.mxu0 0
      %530 = vmatpush1.bf16.msra.mxu0 0
      %531 = vmatprep.subr.bf16.mxu0 0
      %532 = vmatpush1.bf16.msra.mxu0 0
      %533 = vmatprep.subr.bf16.mxu0 0
      %534 = vmatpush1.bf16.msra.mxu0 0
      %535 = vmatprep.subr.bf16.mxu0 0
      %536 = vmatpush1.bf16.msra.mxu0 0
      %537 = vmatprep.subr.bf16.mxu0 0
      %538 = vmatpush1.bf16.msra.mxu0 %v517
      %539 = vmatprep.subr.bf16.mxu0 0
      %540 = vmatpush1.bf16.msra.mxu0 %v516
      %541 = vmatprep.subr.bf16.mxu0 0
      %542 = vmatpush1.bf16.msra.mxu0 %v515
      %543 = vmatprep.subr.bf16.mxu0 0
      %544 = vmatpush1.bf16.msra.mxu0 %v514
      %545 = vmatprep.subr.bf16.mxu0 0
      %546 = vmatpush2.bf16.msra.mxu0 0
      %547 = vmatprep.subr.bf16.mxu0 0
      %548 = vmatpush2.bf16.msra.mxu0 0
      %549 = vmatprep.subr.bf16.mxu0 0
      %550 = vmatpush2.bf16.msra.mxu0 0
      %551 = vmatprep.subr.bf16.mxu0 0
      %552 = vmatpush2.bf16.msra.mxu0 0
      %553 = vmatprep.subr.bf16.mxu0 0
      %554 = vmatpush2.bf16.msra.mxu0 0
      %555 = vmatprep.subr.bf16.mxu0 0
      %556 = vmatpush2.bf16.msra.mxu0 0
      %557 = vmatprep.subr.bf16.mxu0 0
      %558 = vmatpush2.bf16.msra.mxu0 0
      %559 = vmatprep.subr.bf16.mxu0 0
      %560 = vmatpush2.bf16.msra.mxu0 0
      %561 = vmatprep.mubr.bf16.mxu0 0
      %562 = vmatmul.mubr.bf16.gmra.mxu0 %v524
      %v563 = vpop.f32.mrf.mxu0
      %v564 = vadd.f32 %v497, %v563
      %v565 = vpop.f32.mrf.mxu0
      %v566 = vpop.f32.mrf.mxu0
      %v567 = vadd.f32 %v497, %v566
      %v568 = vpop.f32.mrf.mxu0
      %569 = vmatprep.mubr.bf16.mxu0 0
      %570 = vmatmul.mubr.bf16.gmra.mxu0 %v527
      %v571 = vpop.f32.mrf.mxu0
      %v572 = vadd.f32 %v497, %v571
      %v573 = vpop.f32.mrf.mxu0
      %v574 = vpop.f32.mrf.mxu0
      %v575 = vadd.f32 %v497, %v574
      %v576 = vpop.f32.mrf.mxu0
      %577 = vdwg.mxu0
      %v578 = vmax.f32 %v564, 0.0
      %v579 = vmax.f32 %v567, 0.0
      %v580 = vmax.f32 %v572, 0.0
      %v581 = vmax.f32 %v575, 0.0
      %v582 = vpack.c.bf16 %v579, %v578
      %v583 = vpack.c.bf16 %v581, %v580
      %v584 = vld [vmem:[%s6] sm:$0xf]
      %v585 = vld [vmem:[%s6 + $0x4] sm:$0xf]
      %v586 = vld [vmem:[%s6 + $0x8] sm:$0xf]
      %v587 = vld [vmem:[%s6 + $0xc] sm:$0xf]
      %v588 = vld [vmem:[%s6 + $0x10] sm:$0xf]
      %v589 = vld [vmem:[%s6 + $0x14] sm:$0xf]
      %v590 = vld [vmem:[%s6 + $0x18] sm:$0xf]
      %v591 = vld [vmem:[%s6 + $0x1c] sm:$0xf]
      %v592 = vld [vmem:[%s7] sm:$0x1]
      %v593 = vunpack.c.l.bf16 %v592
      %v594 = vlaneseq
      %v595 = vshrl.u32 %v594, 7
      %v596 = vsub.s32 0, %v595
      %v597 = vrot.slane %v593, %v596
      %v606 = vunpack.c.l.b16 %v584
      %v607 = vunpack.c.l.b16 %v585
      %v608 = vunpack.c.l.b16 %v586
      %v609 = vunpack.c.l.b16 %v587
      %v610 = vunpack.c.l.b16 %v588
      %v611 = vunpack.c.l.b16 %v589
      %v612 = vunpack.c.l.b16 %v590
      %v613 = vunpack.c.l.b16 %v591
      %v614 = vpack.c.b16 %v607, %v606
      %v615 = vpack.c.b16 %v609, %v608
      %v616 = vpack.c.b16 %v611, %v610
      %v617 = vpack.c.b16 %v613, %v612
      %v623 = vsel %vm522, %v582, 0
      %v626 = vsel %vm522, %v583, 0
      %628 = vmatprep.subr.bf16.mxu0 0
      %629 = vmatpush1.bf16.msra.mxu0 0
      %630 = vmatprep.subr.bf16.mxu0 0
      %631 = vmatpush1.bf16.msra.mxu0 0
      %632 = vmatprep.subr.bf16.mxu0 0
      %633 = vmatpush1.bf16.msra.mxu0 0
      %634 = vmatprep.subr.bf16.mxu0 0
      %635 = vmatpush1.bf16.msra.mxu0 0
      %636 = vmatprep.subr.bf16.mxu0 0
      %637 = vmatpush1.bf16.msra.mxu0 %v617
      %638 = vmatprep.subr.bf16.mxu0 0
      %639 = vmatpush1.bf16.msra.mxu0 %v616
      %640 = vmatprep.subr.bf16.mxu0 0
      %641 = vmatpush1.bf16.msra.mxu0 %v615
      %642 = vmatprep.subr.bf16.mxu0 0
      %643 = vmatpush1.bf16.msra.mxu0 %v614
      %644 = vmatprep.subr.bf16.mxu0 0
      %645 = vmatpush2.bf16.msra.mxu0 0
      %646 = vmatprep.subr.bf16.mxu0 0
      %647 = vmatpush2.bf16.msra.mxu0 0
      %648 = vmatprep.subr.bf16.mxu0 0
      %649 = vmatpush2.bf16.msra.mxu0 0
      %650 = vmatprep.subr.bf16.mxu0 0
      %651 = vmatpush2.bf16.msra.mxu0 0
      %652 = vmatprep.subr.bf16.mxu0 0
      %653 = vmatpush2.bf16.msra.mxu0 0
      %654 = vmatprep.subr.bf16.mxu0 0
      %655 = vmatpush2.bf16.msra.mxu0 0
      %656 = vmatprep.subr.bf16.mxu0 0
      %657 = vmatpush2.bf16.msra.mxu0 0
      %658 = vmatprep.subr.bf16.mxu0 0
      %659 = vmatpush2.bf16.msra.mxu0 0
      %660 = vmatprep.mubr.bf16.mxu0 0
      %661 = vmatmul.mubr.bf16.gmra.mxu0 %v623
      %v662 = vpop.f32.mrf.mxu0
      %v663 = vadd.f32 %v597, %v662
      %v664 = vpop.f32.mrf.mxu0
      %v665 = vpop.f32.mrf.mxu0
      %v666 = vadd.f32 %v597, %v665
      %v667 = vpop.f32.mrf.mxu0
      %668 = vmatprep.mubr.bf16.mxu0 0
      %669 = vmatmul.mubr.bf16.gmra.mxu0 %v626
      %v670 = vpop.f32.mrf.mxu0
      %v671 = vadd.f32 %v597, %v670
      %v672 = vpop.f32.mrf.mxu0
      %v673 = vpop.f32.mrf.mxu0
      %v674 = vadd.f32 %v597, %v673
      %v675 = vpop.f32.mrf.mxu0
      %676 = vdwg.mxu0
      %v677 = vld [vmem:[%s8] sm:$0xf]
      %v678 = vld [vmem:[%s8 + $0x4] sm:$0xf]
      %v679 = vld [vmem:[%s8 + $0x8] sm:$0xf]
      %v680 = vld [vmem:[%s8 + $0xc] sm:$0xf]
      %v681 = vld [vmem:[%s8 + $0x10] sm:$0xf]
      %v682 = vld [vmem:[%s8 + $0x14] sm:$0xf]
      %v683 = vld [vmem:[%s8 + $0x18] sm:$0xf]
      %v684 = vld [vmem:[%s8 + $0x1c] sm:$0xf]
      %v685 = vld [vmem:[%s9] sm:$0x1]
      %v686 = vunpack.c.l.bf16 %v685
      %v687 = vlaneseq
      %v688 = vshrl.u32 %v687, 7
      %v689 = vsub.s32 0, %v688
      %v690 = vrot.slane %v686, %v689
      %v699 = vunpack.c.l.b16 %v677
      %v700 = vunpack.c.l.b16 %v678
      %v701 = vunpack.c.l.b16 %v679
      %v702 = vunpack.c.l.b16 %v680
      %v703 = vunpack.c.l.b16 %v681
      %v704 = vunpack.c.l.b16 %v682
      %v705 = vunpack.c.l.b16 %v683
      %v706 = vunpack.c.l.b16 %v684
      %v707 = vpack.c.b16 %v700, %v699
      %v708 = vpack.c.b16 %v702, %v701
      %v709 = vpack.c.b16 %v704, %v703
      %v710 = vpack.c.b16 %v706, %v705
      %715 = vmatprep.subr.bf16.mxu0 0
      %716 = vmatpush1.bf16.msra.mxu0 0
      %717 = vmatprep.subr.bf16.mxu0 0
      %718 = vmatpush1.bf16.msra.mxu0 0
      %719 = vmatprep.subr.bf16.mxu0 0
      %720 = vmatpush1.bf16.msra.mxu0 0
      %721 = vmatprep.subr.bf16.mxu0 0
      %722 = vmatpush1.bf16.msra.mxu0 0
      %723 = vmatprep.subr.bf16.mxu0 0
      %724 = vmatpush1.bf16.msra.mxu0 %v710
      %725 = vmatprep.subr.bf16.mxu0 0
      %726 = vmatpush1.bf16.msra.mxu0 %v709
      %727 = vmatprep.subr.bf16.mxu0 0
      %728 = vmatpush1.bf16.msra.mxu0 %v708
      %729 = vmatprep.subr.bf16.mxu0 0
      %730 = vmatpush1.bf16.msra.mxu0 %v707
      %731 = vmatprep.subr.bf16.mxu0 0
      %732 = vmatpush2.bf16.msra.mxu0 0
      %733 = vmatprep.subr.bf16.mxu0 0
      %734 = vmatpush2.bf16.msra.mxu0 0
      %735 = vmatprep.subr.bf16.mxu0 0
      %736 = vmatpush2.bf16.msra.mxu0 0
      %737 = vmatprep.subr.bf16.mxu0 0
      %738 = vmatpush2.bf16.msra.mxu0 0
      %739 = vmatprep.subr.bf16.mxu0 0
      %740 = vmatpush2.bf16.msra.mxu0 0
      %741 = vmatprep.subr.bf16.mxu0 0
      %742 = vmatpush2.bf16.msra.mxu0 0
      %743 = vmatprep.subr.bf16.mxu0 0
      %744 = vmatpush2.bf16.msra.mxu0 0
      %745 = vmatprep.subr.bf16.mxu0 0
      %746 = vmatpush2.bf16.msra.mxu0 0
      %747 = vmatprep.mubr.bf16.mxu0 0
      %748 = vmatmul.mubr.bf16.gmra.mxu0 %v623
      %v749 = vpop.f32.mrf.mxu0
      %v750 = vadd.f32 %v690, %v749
      %v751 = vpop.f32.mrf.mxu0
      %v752 = vpop.f32.mrf.mxu0
      %v753 = vadd.f32 %v690, %v752
      %v754 = vpop.f32.mrf.mxu0
      %755 = vmatprep.mubr.bf16.mxu0 0
      %756 = vmatmul.mubr.bf16.gmra.mxu0 %v626
      %v757 = vpop.f32.mrf.mxu0
      %v758 = vadd.f32 %v690, %v757
      %v759 = vpop.f32.mrf.mxu0
      %v760 = vpop.f32.mrf.mxu0
      %v761 = vadd.f32 %v690, %v760
      %v762 = vpop.f32.mrf.mxu0
      %763 = vdwg.mxu0
      %v764 = vld [vmem:[%s371] sm:$0xf]
      %v765 = vld [vmem:[%s371 + $0x4] sm:$0xf]
      %v766 = vld [vmem:[%s371 + $0x8] sm:$0xf]
      %v767 = vld [vmem:[%s371 + $0xc] sm:$0xf]
      %v768 = vunpack.c.l.bf16 %v764
      %v769 = vunpack.c.l.bf16 %v765
      %v770 = vunpack.c.l.bf16 %v766
      %v771 = vunpack.c.l.bf16 %v767
      %v772 = vsub.f32 %v768, %v663
      %v773 = vsub.f32 %v769, %v666
      %v774 = vsub.f32 %v770, %v671
      %v775 = vsub.f32 %v771, %v674
      %v776 = vsub.f32 0.0, %v750
      %v777 = vsub.f32 0.0, %v753
      %v778 = vsub.f32 0.0, %v758
      %v779 = vsub.f32 0.0, %v761
      %v780 = vmul.f32 %v776, 1.442695
      %v781 = vpow.pop %v780
      %v782 = vmul.f32 %v777, 1.442695
      %v783 = vpow.pop %v782
      %v784 = vmul.f32 %v778, 1.442695
      %v785 = vpow.pop %v784
      %v786 = vmul.f32 %v779, 1.442695
      %v787 = vpow.pop %v786
      %v788 = vmul.f32 %v772, %v781
      %v789 = vmul.f32 %v773, %v783
      %v790 = vmul.f32 %v774, %v785
      %v791 = vmul.f32 %v775, %v787
      %v792 = vmul.f32 %v788, %v788
      %v793 = vmul.f32 %v789, %v789
      %v794 = vmul.f32 %v790, %v790
      %v795 = vmul.f32 %v791, %v791
      %vm796 = vcmask 130048
      %v797 = vsel %vm796, %v792, 0.0
      %798 = vadd.xlane.f32.xlu0 %v797
      %v799 = vpop.xlane.xlu0 %798
      %v800 = vsel %vm796, %v793, 0.0
      %801 = vadd.xlane.f32.xlu0 %v800
      %v802 = vpop.xlane.xlu0 %801
      %v803 = vsel %vm796, %v794, 0.0
      %804 = vadd.xlane.f32.xlu0 %v803
      %v805 = vpop.xlane.xlu0 %804
      %v806 = vsel %vm796, %v795, 0.0
      %807 = vadd.xlane.f32.xlu0 %v806
      %v808 = vpop.xlane.xlu0 %807
      %v809 = vmul.f32 %v799, -0.5
      %v810 = vmul.f32 %v802, -0.5
      %v811 = vmul.f32 %v805, -0.5
      %v812 = vmul.f32 %v808, -0.5
      %v813 = vsel %vm796, %v750, 0.0
      %814 = vadd.xlane.f32.xlu0 %v813
      %v815 = vpop.xlane.xlu0 %814
      %v816 = vsel %vm796, %v753, 0.0
      %817 = vadd.xlane.f32.xlu0 %v816
      %v818 = vpop.xlane.xlu0 %817
      %v819 = vsel %vm796, %v758, 0.0
      %820 = vadd.xlane.f32.xlu0 %v819
      %v821 = vpop.xlane.xlu0 %820
      %v822 = vsel %vm796, %v761, 0.0
      %823 = vadd.xlane.f32.xlu0 %v822
      %v824 = vpop.xlane.xlu0 %823
      %v825 = vsub.f32 %v809, %v815
      %v826 = vsub.f32 %v810, %v818
      %v827 = vsub.f32 %v811, %v821
      %v828 = vsub.f32 %v812, %v824
      %v829 = vsub.f32 %v825, 14.703016
      %v830 = vsub.f32 %v826, 14.703016
      %v831 = vsub.f32 %v827, 14.703016
      %v832 = vsub.f32 %v828, 14.703016
      %vm833 = vcmask 7168
      %834 = vst.msk [vmem:[%s383] sm:$0xff] %vm833, %v829
      %835 = vst.msk [vmem:[%s383 + $0x8] sm:$0xff] %vm833, %v830
      %836 = vst.msk [vmem:[%s383 + $0x10] sm:$0xff] %vm833, %v831
      %837 = vst.msk [vmem:[%s383 + $0x18] sm:$0xff] %vm833, %v832
      %s838 = smul.u32 4, %s21
      %p839 = scmp.lt.s32.totalorder %s838, 7
      %s840 = scalar_select %p839, %s838, 7
      %s841 = smul.addr %s840, 8
      %s842 = scalar_lea.vmem %s10, %s841
      // Predicated region
      $region61: #{tpu_custom_call.1} parent=59 // pred_check
        %p843 = pneg %p259
      $region62: #{tpu_custom_call.1} parent=59 // pred_check_branch
        %845 = sbr.rel (%p843) target = $region64
      $region63: #{tpu_custom_call.1} parent=59 // pred_region
        %s846 = smul.u32 4, %s21
      $region64: #{tpu_custom_call.1} parent=59 // pred_fallthru
        _
    $region60: #{tpu_custom_call.1} parent=5 // pred_fallthru
      _
    %p847 = scmp.le.s32.totalorder 2, %s16
    // Predicated region
    $region65: #{tpu_custom_call.1} parent=5 // pred_check
      %p848 = pneg %p847
    $region66: #{tpu_custom_call.1} parent=5 // pred_check_branch
      %850 = sbr.rel (%p848) target = $region68
    $region67: #{tpu_custom_call.1} parent=5 // pred_region
      %s851 = ssub.s32 %s16, 2
      // Predicated region
      $region69: #{tpu_custom_call.1} parent=67 // pred_check
        %p852 = pneg %p265
      $region70: #{tpu_custom_call.1} parent=67 // pred_check_branch
        %854 = sbr.rel (%p852) target = $region72
      $region71: #{tpu_custom_call.1} parent=67 // pred_region
        %s855 = smul.u32 4, %s22
        %p856 = scmp.lt.s32.totalorder %s855, 7
        %s857 = scalar_select %p856, %s855, 7
        %s858 = smul.addr %s857, 8
        %s859 = scalar_lea.vmem %s10, %s858
      $region72: #{tpu_custom_call.1} parent=67 // pred_fallthru
        _
    $region68: #{tpu_custom_call.1} parent=5 // pred_fallthru
      _
  $region6: #{tpu_custom_call.1} parent=0 // loop_footer
    %s20 = sadd.s32 1, %s16
  $region7: #{tpu_custom_call.1} parent=0 // loop_footer_branch
    %15 = sbr.rel target = $region3
  $region8: #{tpu_custom_call.1} parent=0 // loop_exit
    _

</llo_original>
